<compile_context>
chip_gen: v7x
topology: tpu7x:2x2x1
jax: 0.10.0
libtpu: 0.0.40
codegen_flags: <defaults>
</compile_context>

<pallas_src>
import jax
import jax.numpy as jnp
from jax.experimental import pallas as pl
from jax.experimental.pallas import tpu as pltpu

_COLS = 512             # lane-dense width (multiple of 128)
_MAX_BLOCK_ROWS = 2048  # 2048 x 512 f32 = 4 MiB output per block
_ROW_ALIGN = 32         # uint8 native sublane tiling (also covers 8 for f32)


def _normalize_kernel(x_ref, o_ref):
    # Entire forward pass: cast to f32 and scale by 1/255 (pure VPU work).
    o_ref[...] = x_ref[...].astype(jnp.float32) * jnp.float32(1.0 / 255.0)


def normalize(x):
    """Pallas equivalent of Nomramlization.forward. Accepts any dtype, returns float32."""
    orig_shape = x.shape
    total = 1
    for d in orig_shape:
        total *= int(d)

    cols = _COLS
    rows_needed = max(1, pl.cdiv(total, cols))
    # Block rows: multiple of 32 (uint8 native sublane tiling), capped for VMEM.
    block_rows = min(_MAX_BLOCK_ROWS,
                     ((rows_needed + _ROW_ALIGN - 1) // _ROW_ALIGN) * _ROW_ALIGN)
    # Pad rows so the grid divides evenly -> every block is full / unmasked.
    rows = pl.cdiv(rows_needed, block_rows) * block_rows
    padded_total = rows * cols

    x_flat = x.reshape(-1)
    if padded_total != total:
        x_flat = jnp.pad(x_flat, (0, padded_total - total))
    x2d = x_flat.reshape(rows, cols)

    grid = (rows // block_rows,)

    out = pl.pallas_call(
        _normalize_kernel,
        out_shape=jax.ShapeDtypeStruct((rows, cols), jnp.float32),
        grid_spec=pltpu.PrefetchScalarGridSpec(
            num_scalar_prefetch=0,
            grid=grid,
            in_specs=[pl.BlockSpec((block_rows, cols), lambda i: (i, 0))],
            out_specs=pl.BlockSpec((block_rows, cols), lambda i: (i, 0)),
        ),
        compiler_params=pltpu.CompilerParams(
            dimension_semantics=("parallel",),
            vmem_limit_bytes=48 << 20,
        ),
    )(x2d)

    out_flat = out.reshape(-1)
    if padded_total != total:
        out_flat = out_flat[:total]
    return out_flat.reshape(orig_shape)


if __name__ == "__main__":
    key = jax.random.PRNGKey(0)
    # Image-like NCHW uint8 input at a small shape.
    x = jax.random.randint(key, (2, 4, 16, 16), minval=0, maxval=256, dtype=jnp.int32)
    x = x.astype(jnp.uint8)

    y = normalize(x)
    y = jax.block_until_ready(y)

    # Correctness check against plain JAX reference.
    y_ref = x.astype(jnp.float32) / 255.0
    assert y.shape == x.shape
    assert y.dtype == jnp.float32
    assert jnp.allclose(y, y_ref, atol=1e-6), "mismatch vs reference"

    print("KERNEL_OK")
</pallas_src>

<mosaic_0001>
module attributes {stable_mosaic.version = 11 : i64} {
  func.func @_normalize_kernel(%arg0: i32, %arg1: memref<32x512xi8, #tpu.memory_space<vmem>>, %arg2: memref<32x512xf32, #tpu.memory_space<vmem>>) attributes {dimension_semantics = [#tpu.dimension_semantics<parallel>], iteration_bounds = array<i64: 1>, scalar_prefetch = 0 : i64, scratch_operands = 0 : i64, tpu.core_type = #tpu.core_type<tc>, window_params = [{transform_indices = @transform_0, window_bounds = array<i64: 32, 512>}, {transform_indices = @transform_1, window_bounds = array<i64: 32, 512>}]} {
    %c0 = arith.constant 0 : index
    %c0_0 = arith.constant 0 : index
    %0 = vector.load %arg1[%c0, %c0_0] : memref<32x512xi8, #tpu.memory_space<vmem>>, vector<32x512xi8>
    %1 = arith.uitofp %0 : vector<32x512xi8> to vector<32x512xf32>
    %cst = arith.constant 0.00392156886 : f32
    %2 = vector.broadcast %cst : f32 to vector<32x512xf32>
    %3 = arith.mulf %1, %2 : vector<32x512xf32>
    %c0_1 = arith.constant 0 : index
    %c0_2 = arith.constant 0 : index
    %4 = vector.load %arg2[%c0_1, %c0_2] : memref<32x512xf32, #tpu.memory_space<vmem>>, vector<32x512xf32>
    tpu.vector_store %arg2[%c0_1, %c0_2], %3 {strides = array<i32>} : memref<32x512xf32, #tpu.memory_space<vmem>>, vector<32x512xf32>,
    return
  }
  func.func @transform_0(%arg0: i32) -> (i32, i32) {
    %c0_i32 = arith.constant 0 : i32
    %c0_i32_0 = arith.constant 0 : i32
    return %arg0, %c0_i32 : i32, i32
  }
  func.func @transform_1(%arg0: i32) -> (i32, i32) {
    %c0_i32 = arith.constant 0 : i32
    %c0_i32_0 = arith.constant 0 : i32
    return %arg0, %c0_i32 : i32, i32
  }
}

</mosaic_0001>

<llo_original>
// kernel: tpu_custom_call.1
$region0: #{tpu_custom_call.1}
  #allocation0 [shape = 'u32[]', space=smem, size = 0x4, offset = 0x4, fixed_abs, tag = 'smem constant byte address 0x4 - core index']
  #allocation1 [shape = 'u32[144,128]{1,0:T(1,128)}', space=vmem, size = 0x12000, scoped, tag = 'internal scratch']
  %s0 = inlined_call_operand.hbm [shape: u8[32,512], index: 0, kind: input, shape index: {}]
  %s1 = inlined_call_operand.hbm [shape: f32[32,512], index: 1, kind: output, shape index: {}]
  %s2 = sld [smem:[#allocation0]]
  $region18: #{tpu_custom_call.1} parent=0
    _
  %s4 = ssub.s32 1, %s2
  %s5 = scalar_select 0, %s4, %s2
  $region1: #{tpu_custom_call.1} parent=0
    #allocation2 [shape = 'u8[16384]{0}', space=vmem, size = 0x4000, scoped, tag = 'input window, operand 0, single buffered']
    #allocation3 [shape = 's32[1]{0}', space=sflag, size = 0x4, scoped, tag = 'scoped memory for tpu_custom_call.1']
    #allocation4 [shape = 's32[1]{0}', space=sflag, size = 0x4, scoped, tag = 'scoped memory for tpu_custom_call.1']
    #allocation5 [shape = 'u8[65536]{0}', space=vmem, size = 0x10000, scoped, tag = 'output window, operand 0, single buffered']
    %6 = vsyncpa [#allocation3], 0
    %7 = vsyncpa [#allocation4], 0
    // Predicated region
    $region2: #{tpu_custom_call.1} parent=1 // pred_check
      _
    $region3: #{tpu_custom_call.1} parent=1 // pred_check_branch
      %9 = sbr.rel (0) target = $region5
    $region4: #{tpu_custom_call.1} parent=1 // pred_region
      %s11 = ssub.s32 512, 512
      %12 = vsyncadd [#allocation3], %s11
      %s14 = sshll.u32 [#allocation2], 4
      %s15 = int_to_ptr.vmem [resolvable:$true] %s14
      %17 = dma.hbm_to_vmem [thread:$0]  %s0, 512, %s15, [#allocation3]
    $region5: #{tpu_custom_call.1} parent=1 // pred_fallthru
      _
    // Predicated region
    $region6: #{tpu_custom_call.1} parent=1 // pred_check
      _
    $region7: #{tpu_custom_call.1} parent=1 // pred_check_branch
      %19 = sbr.rel (0) target = $region9
    $region8: #{tpu_custom_call.1} parent=1 // pred_region
      %20 = dma.done [#allocation3], 512
    $region9: #{tpu_custom_call.1} parent=1 // pred_fallthru
      _
    %v21 = vld [vmem:[#allocation2] sm:$0xff]
    %v22 = vld [vmem:[#allocation2 + $0x8] sm:$0xff]
    %v23 = vld [vmem:[#allocation2 + $0x10] sm:$0xff]
    %v24 = vld [vmem:[#allocation2 + $0x18] sm:$0xff]
    %v25 = vunpack.c.0.s8 %v21
    %v26 = vunpack.c.0.s8 %v22
    %v27 = vunpack.c.0.s8 %v23
    %v28 = vunpack.c.0.s8 %v24
    %v29 = vunpack.c.1.s8 %v21
    %v30 = vunpack.c.1.s8 %v22
    %v31 = vunpack.c.1.s8 %v23
    %v32 = vunpack.c.1.s8 %v24
    %v33 = vunpack.c.2.s8 %v21
    %v34 = vunpack.c.2.s8 %v22
    %v35 = vunpack.c.2.s8 %v23
    %v36 = vunpack.c.2.s8 %v24
    %v37 = vunpack.c.3.s8 %v21
    %v38 = vunpack.c.3.s8 %v22
    %v39 = vunpack.c.3.s8 %v23
    %v40 = vunpack.c.3.s8 %v24
    %v41 = vand.u32 %v25, 255
    %v42 = vand.u32 %v26, 255
    %v43 = vand.u32 %v27, 255
    %v44 = vand.u32 %v28, 255
    %v45 = vand.u32 %v29, 255
    %v46 = vand.u32 %v30, 255
    %v47 = vand.u32 %v31, 255
    %v48 = vand.u32 %v32, 255
    %v49 = vand.u32 %v33, 255
    %v50 = vand.u32 %v34, 255
    %v51 = vand.u32 %v35, 255
    %v52 = vand.u32 %v36, 255
    %v53 = vand.u32 %v37, 255
    %v54 = vand.u32 %v38, 255
    %v55 = vand.u32 %v39, 255
    %v56 = vand.u32 %v40, 255
    %v57 = vcvt.s32.f32 %v41
    %v58 = vcvt.s32.f32 %v42
    %v59 = vcvt.s32.f32 %v43
    %v60 = vcvt.s32.f32 %v44
    %v61 = vcvt.s32.f32 %v45
    %v62 = vcvt.s32.f32 %v46
    %v63 = vcvt.s32.f32 %v47
    %v64 = vcvt.s32.f32 %v48
    %v65 = vcvt.s32.f32 %v49
    %v66 = vcvt.s32.f32 %v50
    %v67 = vcvt.s32.f32 %v51
    %v68 = vcvt.s32.f32 %v52
    %v69 = vcvt.s32.f32 %v53
    %v70 = vcvt.s32.f32 %v54
    %v71 = vcvt.s32.f32 %v55
    %v72 = vcvt.s32.f32 %v56
    %v73 = vmul.f32 %v57, 0.003921569
    %v74 = vmul.f32 %v58, 0.003921569
    %v75 = vmul.f32 %v59, 0.003921569
    %v76 = vmul.f32 %v60, 0.003921569
    %v77 = vmul.f32 %v61, 0.003921569
    %v78 = vmul.f32 %v62, 0.003921569
    %v79 = vmul.f32 %v63, 0.003921569
    %v80 = vmul.f32 %v64, 0.003921569
    %v81 = vmul.f32 %v65, 0.003921569
    %v82 = vmul.f32 %v66, 0.003921569
    %v83 = vmul.f32 %v67, 0.003921569
    %v84 = vmul.f32 %v68, 0.003921569
    %v85 = vmul.f32 %v69, 0.003921569
    %v86 = vmul.f32 %v70, 0.003921569
    %v87 = vmul.f32 %v71, 0.003921569
    %v88 = vmul.f32 %v72, 0.003921569
    %89 = vst [vmem:[#allocation5] sm:$0xff] %v73
    %90 = vst [vmem:[#allocation5 + $0x8] sm:$0xff] %v74
    %91 = vst [vmem:[#allocation5 + $0x10] sm:$0xff] %v75
    %92 = vst [vmem:[#allocation5 + $0x18] sm:$0xff] %v76
    %93 = vst [vmem:[#allocation5 + $0x20] sm:$0xff] %v77
    %94 = vst [vmem:[#allocation5 + $0x28] sm:$0xff] %v78
    %95 = vst [vmem:[#allocation5 + $0x30] sm:$0xff] %v79
    %96 = vst [vmem:[#allocation5 + $0x38] sm:$0xff] %v80
    %97 = vst [vmem:[#allocation5 + $0x40] sm:$0xff] %v81
    %98 = vst [vmem:[#allocation5 + $0x48] sm:$0xff] %v82
    %99 = vst [vmem:[#allocation5 + $0x50] sm:$0xff] %v83
    %100 = vst [vmem:[#allocation5 + $0x58] sm:$0xff] %v84
    %101 = vst [vmem:[#allocation5 + $0x60] sm:$0xff] %v85
    %102 = vst [vmem:[#allocation5 + $0x68] sm:$0xff] %v86
    %103 = vst [vmem:[#allocation5 + $0x70] sm:$0xff] %v87
    %104 = vst [vmem:[#allocation5 + $0x78] sm:$0xff] %v88
    // Predicated region
    $region10: #{tpu_custom_call.1} parent=1 // pred_check
      _
    $region11: #{tpu_custom_call.1} parent=1 // pred_check_branch
      %106 = sbr.rel (0) target = $region13
    $region12: #{tpu_custom_call.1} parent=1 // pred_region
      %s108 = ssub.s32 2048, 2048
      %109 = vsyncadd [#allocation4], %s108
      %s110 = sshll.u32 [#allocation5], 4
      %s111 = int_to_ptr.vmem [resolvable:$true] %s110
      %116 = dma.vmem_to_hbm [thread:$0]  %s111, 2048, %s1, [#allocation4], 512, 512, 32
    $region13: #{tpu_custom_call.1} parent=1 // pred_fallthru
      _
    // Predicated region
    $region14: #{tpu_custom_call.1} parent=1 // pred_check
      _
    $region15: #{tpu_custom_call.1} parent=1 // pred_check_branch
      %118 = sbr.rel (0) target = $region17
    $region16: #{tpu_custom_call.1} parent=1 // pred_region
      %119 = dma.done [#allocation4], 2048
    $region17: #{tpu_custom_call.1} parent=1 // pred_fallthru
      _
    %120 = vsyncpa [#allocation3], 1
    %121 = vsyncpa [#allocation4], 1

</llo_original>
